<compile_context>
chip_gen: v7x
topology: tpu7x:2x2x1
jax: 0.10.0
libtpu: 0.0.40
codegen_flags: <defaults>
</compile_context>

<pallas_src>
import functools

import jax
import jax.numpy as jnp
from jax.experimental import pallas as pl
from jax.experimental.pallas import tpu as pltpu

FLP_LEN = 75  # hard-coded in the reference module (75 "X" context tokens for flp)


def _largest_fitting_divisor(n, unit_bytes, target_bytes):
    """Largest divisor d of n with d*unit_bytes <= target; prefer an even grid (v7x: 2 TCs)."""
    divs = [d for d in range(1, n + 1) if n % d == 0 and d * unit_bytes <= target_bytes]
    if not divs:
        return 1
    best = max(divs)
    even = [d for d in divs if (n // d) % 2 == 0]
    if even and max(even) * 4 >= best:   # don't shrink blocks by more than 4x for evenness
        return max(even)
    return best


def _class_only_kernel(n_ctx, shared_ctx, prefix_ref, ctx_ref, suffix_ref, out_ref):
    rows = out_ref.shape[0]
    out_ref[:, 0:1, :] = prefix_ref[...]
    if shared_ctx:
        out_ref[:, 1:1 + n_ctx, :] = jnp.broadcast_to(
            ctx_ref[...], (rows,) + ctx_ref.shape[1:])
    else:
        out_ref[:, 1:1 + n_ctx, :] = ctx_ref[...]
    out_ref[:, 1 + n_ctx:, :] = suffix_ref[...]


def _group_kernel(n_ctx, n_flp, npp, k, shared_ctx, shared_flp,
                  prefix_ref, ctx_ref, suffix_ref,
                  flp_prefix_ref, flp_ref, flp_suffix_ref,
                  out_ref):
    s = pl.program_id(0)
    rpg = n_flp + npp
    suf_off = 1 + n_ctx
    flp_off = 1 + FLP_LEN

    # Hoisted broadcasts (JAX does not CSE broadcast_in_dim across the unrolled loop).
    ctx_rows = (jnp.broadcast_to(ctx_ref[...], (npp,) + ctx_ref.shape[1:])
                if shared_ctx else None)
    flp_rows = (jnp.broadcast_to(flp_ref[...], (n_flp,) + flp_ref.shape[1:])
                if shared_flp else None)

    for j in range(k):                 # static unroll over the k groups of this block
        r0 = j * rpg                   # static output row offset within the block
        c0 = j * npp                   # static class row offset within the class block
        g = s * k + j                  # dynamic global group index

        # flp rows: pieces are VMEM-resident whole arrays (constant index_map), so the
        # overlapping windows flp[g : g+n_flp] were read from HBM exactly once.
        out_ref[r0:r0 + n_flp, 0:1, :] = flp_prefix_ref[pl.ds(g, n_flp)]
        out_ref[r0:r0 + n_flp, 1:flp_off, :] = (
            flp_rows if shared_flp else flp_ref[pl.ds(g, n_flp)])
        out_ref[r0:r0 + n_flp, flp_off:, :] = flp_suffix_ref[pl.ds(g, n_flp)]

        # class rows: class_i ++ suffix_i == suffix[i] exactly ('pre' position).
        rc = r0 + n_flp
        out_ref[rc:rc + npp, 0:1, :] = prefix_ref[c0:c0 + npp]
        out_ref[rc:rc + npp, 1:suf_off, :] = (
            ctx_rows if shared_ctx else ctx_ref[c0:c0 + npp])
        out_ref[rc:rc + npp, suf_off:, :] = suffix_ref[c0:c0 + npp]


def prompt_learner_forward(params, n_cls, n_flp=0, num_patch_prompt=0):
    prefix = params["token_prefix"]          # (n_cls, 1, D)
    ctx = params["ctx"]                      # (n_cls, n_ctx, D) or (n_ctx, D) if shared
    suffix = params["token_suffix"]          # (n_cls, L - 1 - n_ctx, D)

    D = prefix.shape[-1]
    assert D % 128 == 0, (
        f"ctx_dim must be a multiple of 128 for lane-dense stores (got {D})")

    shared_ctx = ctx.ndim == 2
    ctx_arr = ctx[None] if shared_ctx else ctx     # reshape only; no broadcast materialization
    n_ctx = ctx_arr.shape[1]
    suf_len = suffix.shape[1]
    L = 1 + n_ctx + suf_len
    dtype = ctx_arr.dtype
    isz = jnp.dtype(dtype).itemsize

    target_blk = 2 << 20                            # ~2 MiB output blocks (fits all gens)
    use_flp = n_flp > 0 and num_patch_prompt > 0

    if not use_flp:
        rows = _largest_fitting_divisor(n_cls, L * D * isz, target_blk)
        ctx_spec = (pl.BlockSpec((1, n_ctx, D), lambda i: (0, 0, 0)) if shared_ctx
                    else pl.BlockSpec((rows, n_ctx, D), lambda i: (i, 0, 0)))
        in_bytes = int((prefix.size + ctx_arr.size + suffix.size) * isz)
        out_bytes = int(n_cls * L * D * isz)
        return pl.pallas_call(
            functools.partial(_class_only_kernel, n_ctx, shared_ctx),
            out_shape=jax.ShapeDtypeStruct((n_cls, L, D), dtype),
            grid_spec=pltpu.PrefetchScalarGridSpec(
                num_scalar_prefetch=0,
                grid=(n_cls // rows,),
                in_specs=[pl.BlockSpec((rows, 1, D), lambda i: (i, 0, 0)),
                          ctx_spec,
                          pl.BlockSpec((rows, suf_len, D), lambda i: (i, 0, 0))],
                out_specs=pl.BlockSpec((rows, L, D), lambda i: (i, 0, 0)),
            ),
            compiler_params=pltpu.CompilerParams(dimension_semantics=("parallel",)),
            cost_estimate=pl.CostEstimate(flops=0, transcendentals=0,
                                          bytes_accessed=in_bytes + out_bytes),
        )(prefix, ctx_arr, suffix)

    flp_prefix = params["flp_token_prefix"]  # (n_flp_rows, 1, D)
    flp = params["flp"]                      # (n_flp_rows, 75, D) or (75, D) if shared
    flp_suffix = params["flp_token_suffix"]  # (n_flp_rows, L - 76, D)
    shared_flp = flp.ndim == 2
    flp_arr = flp[None] if shared_flp else flp

    npp = num_patch_prompt
    assert n_cls % npp == 0, "n_cls must be divisible by num_patch_prompt"
    n_groups = n_cls // npp
    flp_suf_len = flp_suffix.shape[1]
    assert 1 + FLP_LEN + flp_suf_len == L, "flp prompt length must match class prompt length"
    # Overlapping windows flp_*[g : g+n_flp] must stay in bounds (the PyTorch reference's
    # slicing would silently clamp; an out-of-bounds VMEM read here would not).
    assert flp_prefix.shape[0] >= n_groups - 1 + n_flp, "flp_token_prefix too small"
    assert flp_suffix.shape[0] >= n_groups - 1 + n_flp, "flp_token_suffix too small"
    if not shared_flp:
        assert flp_arr.shape[0] >= n_groups - 1 + n_flp, "flp too small"

    rpg = n_flp + npp
    n_out = n_groups * rpg
    k = _largest_fitting_divisor(n_groups, rpg * L * D * isz, target_blk)

    ctx_spec = (pl.BlockSpec((1, n_ctx, D), lambda s: (0, 0, 0)) if shared_ctx
                else pl.BlockSpec((k * npp, n_ctx, D), lambda s: (s, 0, 0)))
    flp_spec = pl.BlockSpec(tuple(flp_arr.shape), lambda s: (0, 0, 0))  # resident, fetched once

    in_bytes = int((prefix.size + ctx_arr.size + suffix.size
                    + flp_prefix.size + flp_arr.size + flp_suffix.size) * isz)
    out_bytes = int(n_out * L * D * isz)

    # VMEM footprint: double-buffered per-step blocks + resident flp/shared pieces.
    vmem_est = int(2 * (k * rpg + k * npp) * L * D * isz
                   + 2 * (flp_prefix.size + flp_arr.size + flp_suffix.size) * isz
                   + (2 * ctx_arr.size * isz if shared_ctx else 0))
    vmem_limit = int(vmem_est * 1.25) if vmem_est > (30 << 20) else None

    return pl.pallas_call(
        functools.partial(_group_kernel, n_ctx, n_flp, npp, k, shared_ctx, shared_flp),
        out_shape=jax.ShapeDtypeStruct((n_out, L, D), dtype),
        grid_spec=pltpu.PrefetchScalarGridSpec(
            num_scalar_prefetch=0,
            grid=(n_groups // k,),
            in_specs=[
                pl.BlockSpec((k * npp, 1, D), lambda s: (s, 0, 0)),
                ctx_spec,
                pl.BlockSpec((k * npp, suf_len, D), lambda s: (s, 0, 0)),
                pl.BlockSpec(tuple(flp_prefix.shape), lambda s: (0, 0, 0)),
                flp_spec,
                pl.BlockSpec(tuple(flp_suffix.shape), lambda s: (0, 0, 0)),
            ],
            out_specs=pl.BlockSpec((k * rpg, L, D), lambda s: (s, 0, 0)),
        ),
        compiler_params=pltpu.CompilerParams(dimension_semantics=("parallel",),
                                             vmem_limit_bytes=vmem_limit),
        cost_estimate=pl.CostEstimate(flops=0, transcendentals=0,
                                      bytes_accessed=in_bytes + out_bytes),
    )(prefix, ctx_arr, suffix, flp_prefix, flp_arr, flp_suffix)


def reference_forward(params, n_cls, n_flp, num_patch_prompt):
    """Pure-jnp replica of the PyTorch forward (class_token_position == 'pre')."""
    ctx = params["ctx"]
    if ctx.ndim == 2:
        ctx = jnp.broadcast_to(ctx[None], (n_cls,) + ctx.shape)
    use_flp = n_flp > 0 and num_patch_prompt > 0
    if use_flp:
        flp = params["flp"]
        n_groups = n_cls // num_patch_prompt
        if flp.ndim == 2:
            flp = jnp.broadcast_to(flp[None], (n_groups * n_flp,) + flp.shape)
    prompts = []
    for i in range(n_cls):
        if use_flp and i % num_patch_prompt == 0:
            cur = i // num_patch_prompt
            prompts.append(jnp.concatenate(
                [params["flp_token_prefix"][cur:cur + n_flp],
                 flp[cur:cur + n_flp],
                 params["flp_token_suffix"][cur:cur + n_flp]], axis=1))
        prompts.append(jnp.concatenate(
            [params["token_prefix"][i:i + 1],
             ctx[i:i + 1],
             params["token_suffix"][i:i + 1]], axis=1))
    return jnp.concatenate(prompts, axis=0)


if __name__ == "__main__":
    dtype = jnp.float32
    ctx_dim = 128        # lane-dense; real CLIP dims (512 / 768) also satisfy D % 128 == 0
    seq_len = 80         # total tokenized length (>= 1 + 75 + 1)
    n_ctx = 4

    # --- Config 1: class-specific ctx + flp prompts -------------------------------
    n_cls, n_flp, npp = 4, 2, 2
    n_flp_rows = (n_cls // npp) * n_flp
    k1, k2, k3, k4 = jax.random.split(jax.random.PRNGKey(0), 4)
    ctx_vectors = 0.02 * jax.random.normal(k1, (n_cls, n_ctx, ctx_dim), dtype)
    flp_vectors = 0.02 * jax.random.normal(k2, (n_flp_rows, FLP_LEN, ctx_dim), dtype)
    # TODO(synk): real module embeds tokenized class-name prompts via the frozen CLIP
    # token embedding; here the frozen embedding buffers are synthesized deterministically.
    embedding = jax.random.normal(k3, (n_cls, seq_len, ctx_dim), dtype)
    embedding_flp = jax.random.normal(k4, (n_flp_rows, seq_len, ctx_dim), dtype)
    params = {
        "ctx": ctx_vectors,
        "flp": flp_vectors,
        "token_prefix": embedding[:, :1, :],
        "token_suffix": embedding[:, 1 + n_ctx:, :],
        "flp_token_prefix": embedding_flp[:, :1, :],
        "flp_token_suffix": embedding_flp[:, 1 + FLP_LEN:, :],
    }
    out = jax.block_until_ready(prompt_learner_forward(params, n_cls, n_flp, npp))
    ref = reference_forward(params, n_cls, n_flp, npp)
    assert out.shape == ref.shape == (n_cls + n_flp_rows, seq_len, ctx_dim), out.shape
    assert jnp.array_equal(out, ref), "mismatch (class-specific ctx + flp)"

    # --- Config 2: shared (generic) ctx + shared flp ------------------------------
    n_cls2, n_flp2, npp2 = 6, 2, 3
    n_flp_rows2 = (n_cls2 // npp2) * n_flp2
    k5, k6, k7, k8 = jax.random.split(jax.random.PRNGKey(1), 4)
    emb2 = jax.random.normal(k7, (n_cls2, seq_len, ctx_dim), dtype)
    emb2_flp = jax.random.normal(k8, (n_flp_rows2, seq_len, ctx_dim), dtype)
    params2 = {
        "ctx": 0.02 * jax.random.normal(k5, (n_ctx, ctx_dim), dtype),
        "flp": 0.02 * jax.random.normal(k6, (FLP_LEN, ctx_dim), dtype),
        "token_prefix": emb2[:, :1, :],
        "token_suffix": emb2[:, 1 + n_ctx:, :],
        "flp_token_prefix": emb2_flp[:, :1, :],
        "flp_token_suffix": emb2_flp[:, 1 + FLP_LEN:, :],
    }
    out2 = jax.block_until_ready(prompt_learner_forward(params2, n_cls2, n_flp2, npp2))
    ref2 = reference_forward(params2, n_cls2, n_flp2, npp2)
    assert out2.shape == ref2.shape == (n_cls2 + n_flp_rows2, seq_len, ctx_dim), out2.shape
    assert jnp.array_equal(out2, ref2), "mismatch (shared ctx/flp)"

    # --- Config 3: class prompts only (no flp) -------------------------------------
    n_cls3 = 5
    k9, k10 = jax.random.split(jax.random.PRNGKey(2), 2)
    emb3 = jax.random.normal(k10, (n_cls3, seq_len, ctx_dim), dtype)
    params3 = {
        "ctx": 0.02 * jax.random.normal(k9, (n_cls3, n_ctx, ctx_dim), dtype),
        "token_prefix": emb3[:, :1, :],
        "token_suffix": emb3[:, 1 + n_ctx:, :],
    }
    out3 = jax.block_until_ready(prompt_learner_forward(params3, n_cls3))
    ref3 = reference_forward(params3, n_cls3, 0, 0)
    assert out3.shape == ref3.shape == (n_cls3, seq_len, ctx_dim), out3.shape
    assert jnp.array_equal(out3, ref3), "mismatch (class-only)"

    print("KERNEL_OK")
</pallas_src>

<mosaic_0001>
module attributes {stable_mosaic.version = 11 : i64} {
  func.func @_group_kernel(%arg0: i32, %arg1: memref<2x1x128xf32, #tpu.memory_space<vmem>>, %arg2: memref<2x4x128xf32, #tpu.memory_space<vmem>>, %arg3: memref<2x75x128xf32, #tpu.memory_space<vmem>>, %arg4: memref<4x1x128xf32, #tpu.memory_space<vmem>>, %arg5: memref<4x75x128xf32, #tpu.memory_space<vmem>>, %arg6: memref<4x4x128xf32, #tpu.memory_space<vmem>>, %arg7: memref<4x80x128xf32, #tpu.memory_space<vmem>>) attributes {dimension_semantics = [#tpu.dimension_semantics<parallel>], iteration_bounds = array<i64: 2>, scalar_prefetch = 0 : i64, scratch_operands = 0 : i64, tpu.core_type = #tpu.core_type<tc>, window_params = [{transform_indices = @transform_0, window_bounds = array<i64: 2, 1, 128>}, {transform_indices = @transform_1, window_bounds = array<i64: 2, 4, 128>}, {transform_indices = @transform_2, window_bounds = array<i64: 2, 75, 128>}, {pipeline_mode = #tpu.pipeline_mode<synchronous>, transform_indices = @transform_3, window_bounds = array<i64: 4, 1, 128>}, {pipeline_mode = #tpu.pipeline_mode<synchronous>, transform_indices = @transform_4, window_bounds = array<i64: 4, 75, 128>}, {pipeline_mode = #tpu.pipeline_mode<synchronous>, transform_indices = @transform_5, window_bounds = array<i64: 4, 4, 128>}, {transform_indices = @transform_6, window_bounds = array<i64: 4, 80, 128>}]} {
    %c1_i32 = arith.constant 1 : i32
    %0 = arith.muli %arg0, %c1_i32 : i32
    %c0_i32 = arith.constant 0 : i32
    %1 = arith.addi %0, %c0_i32 : i32
    %2 = arith.index_cast %1 : i32 to index
    %c0 = arith.constant 0 : index
    %c0_0 = arith.constant 0 : index
    %3 = vector.load %arg4[%2, %c0, %c0_0] : memref<4x1x128xf32, #tpu.memory_space<vmem>>, vector<2x1x128xf32>
    %c0_1 = arith.constant 0 : index
    %c0_2 = arith.constant 0 : index
    %c0_3 = arith.constant 0 : index
    %4 = vector.load %arg7[%c0_1, %c0_2, %c0_3] : memref<4x80x128xf32, #tpu.memory_space<vmem>>, vector<2x1x128xf32>
    tpu.vector_store %arg7[%c0_1, %c0_2, %c0_3], %3 {strides = array<i32>} : memref<4x80x128xf32, #tpu.memory_space<vmem>>, vector<2x1x128xf32>,
    %5 = arith.index_cast %1 : i32 to index
    %c0_4 = arith.constant 0 : index
    %c0_5 = arith.constant 0 : index
    %6 = vector.load %arg5[%5, %c0_4, %c0_5] : memref<4x75x128xf32, #tpu.memory_space<vmem>>, vector<2x75x128xf32>
    %c0_6 = arith.constant 0 : index
    %c1 = arith.constant 1 : index
    %c0_7 = arith.constant 0 : index
    %7 = vector.load %arg7[%c0_6, %c1, %c0_7] : memref<4x80x128xf32, #tpu.memory_space<vmem>>, vector<2x75x128xf32>
    tpu.vector_store %arg7[%c0_6, %c1, %c0_7], %6 {strides = array<i32>} : memref<4x80x128xf32, #tpu.memory_space<vmem>>, vector<2x75x128xf32>,
    %8 = arith.index_cast %1 : i32 to index
    %c0_8 = arith.constant 0 : index
    %c0_9 = arith.constant 0 : index
    %9 = vector.load %arg6[%8, %c0_8, %c0_9] : memref<4x4x128xf32, #tpu.memory_space<vmem>>, vector<2x4x128xf32>
    %c0_10 = arith.constant 0 : index
    %c76 = arith.constant 76 : index
    %c0_11 = arith.constant 0 : index
    %10 = vector.load %arg7[%c0_10, %c76, %c0_11] : memref<4x80x128xf32, #tpu.memory_space<vmem>>, vector<2x4x128xf32>
    tpu.vector_store %arg7[%c0_10, %c76, %c0_11], %9 {strides = array<i32>} : memref<4x80x128xf32, #tpu.memory_space<vmem>>, vector<2x4x128xf32>,
    %c0_12 = arith.constant 0 : index
    %c0_13 = arith.constant 0 : index
    %c0_14 = arith.constant 0 : index
    %11 = vector.load %arg1[%c0_12, %c0_13, %c0_14] : memref<2x1x128xf32, #tpu.memory_space<vmem>>, vector<2x1x128xf32>
    %c2 = arith.constant 2 : index
    %c0_15 = arith.constant 0 : index
    %c0_16 = arith.constant 0 : index
    %12 = vector.load %arg7[%c2, %c0_15, %c0_16] : memref<4x80x128xf32, #tpu.memory_space<vmem>>, vector<2x1x128xf32>
    tpu.vector_store %arg7[%c2, %c0_15, %c0_16], %11 {strides = array<i32>} : memref<4x80x128xf32, #tpu.memory_space<vmem>>, vector<2x1x128xf32>,
    %c0_17 = arith.constant 0 : index
    %c0_18 = arith.constant 0 : index
    %c0_19 = arith.constant 0 : index
    %13 = vector.load %arg2[%c0_17, %c0_18, %c0_19] : memref<2x4x128xf32, #tpu.memory_space<vmem>>, vector<2x4x128xf32>
    %c2_20 = arith.constant 2 : index
    %c1_21 = arith.constant 1 : index
    %c0_22 = arith.constant 0 : index
    %14 = vector.load %arg7[%c2_20, %c1_21, %c0_22] : memref<4x80x128xf32, #tpu.memory_space<vmem>>, vector<2x4x128xf32>
    tpu.vector_store %arg7[%c2_20, %c1_21, %c0_22], %13 {strides = array<i32>} : memref<4x80x128xf32, #tpu.memory_space<vmem>>, vector<2x4x128xf32>,
    %c0_23 = arith.constant 0 : index
    %c0_24 = arith.constant 0 : index
    %c0_25 = arith.constant 0 : index
    %15 = vector.load %arg3[%c0_23, %c0_24, %c0_25] : memref<2x75x128xf32, #tpu.memory_space<vmem>>, vector<2x75x128xf32>
    %c2_26 = arith.constant 2 : index
    %c5 = arith.constant 5 : index
    %c0_27 = arith.constant 0 : index
    %16 = vector.load %arg7[%c2_26, %c5, %c0_27] : memref<4x80x128xf32, #tpu.memory_space<vmem>>, vector<2x75x128xf32>
    tpu.vector_store %arg7[%c2_26, %c5, %c0_27], %15 {strides = array<i32>} : memref<4x80x128xf32, #tpu.memory_space<vmem>>, vector<2x75x128xf32>,
    return
  }
  func.func @transform_0(%arg0: i32) -> (i32, i32, i32) {
    %c0_i32 = arith.constant 0 : i32
    %c0_i32_0 = arith.constant 0 : i32
    %c0_i32_1 = arith.constant 0 : i32
    return %arg0, %c0_i32, %c0_i32_0 : i32, i32, i32
  }
  func.func @transform_1(%arg0: i32) -> (i32, i32, i32) {
    %c0_i32 = arith.constant 0 : i32
    %c0_i32_0 = arith.constant 0 : i32
    %c0_i32_1 = arith.constant 0 : i32
    return %arg0, %c0_i32, %c0_i32_0 : i32, i32, i32
  }
  func.func @transform_2(%arg0: i32) -> (i32, i32, i32) {
    %c0_i32 = arith.constant 0 : i32
    %c0_i32_0 = arith.constant 0 : i32
    %c0_i32_1 = arith.constant 0 : i32
    return %arg0, %c0_i32, %c0_i32_0 : i32, i32, i32
  }
  func.func @transform_3(%arg0: i32) -> (i32, i32, i32) {
    %c0_i32 = arith.constant 0 : i32
    %c0_i32_0 = arith.constant 0 : i32
    %c0_i32_1 = arith.constant 0 : i32
    %c0_i32_2 = arith.constant 0 : i32
    return %c0_i32, %c0_i32_0, %c0_i32_1 : i32, i32, i32
  }
  func.func @transform_4(%arg0: i32) -> (i32, i32, i32) {
    %c0_i32 = arith.constant 0 : i32
    %c0_i32_0 = arith.constant 0 : i32
    %c0_i32_1 = arith.constant 0 : i32
    %c0_i32_2 = arith.constant 0 : i32
    return %c0_i32, %c0_i32_0, %c0_i32_1 : i32, i32, i32
  }
  func.func @transform_5(%arg0: i32) -> (i32, i32, i32) {
    %c0_i32 = arith.constant 0 : i32
    %c0_i32_0 = arith.constant 0 : i32
    %c0_i32_1 = arith.constant 0 : i32
    %c0_i32_2 = arith.constant 0 : i32
    return %c0_i32, %c0_i32_0, %c0_i32_1 : i32, i32, i32
  }
  func.func @transform_6(%arg0: i32) -> (i32, i32, i32) {
    %c0_i32 = arith.constant 0 : i32
    %c0_i32_0 = arith.constant 0 : i32
    %c0_i32_1 = arith.constant 0 : i32
    return %arg0, %c0_i32, %c0_i32_0 : i32, i32, i32
  }
}

</mosaic_0001>

<llo_original>
// kernel: tpu_custom_call.1
$region0: #{tpu_custom_call.1}
  #allocation0 [shape = 'u32[]', space=smem, size = 0x4, offset = 0x4, fixed_abs, tag = 'smem constant byte address 0x4 - core index']
  #allocation1 [shape = 'u32[144,128]{1,0:T(1,128)}', space=vmem, size = 0x12000, scoped, tag = 'internal scratch']
  %s0 = inlined_call_operand.vmem [shape: f32[4,1,128], index: 0, kind: input, shape index: {}]
  %s1 = inlined_call_operand.vmem [shape: f32[4,4,128], index: 1, kind: input, shape index: {}]
  %s2 = inlined_call_operand.vmem [shape: f32[4,75,128], index: 2, kind: input, shape index: {}]
  %s3 = inlined_call_operand.vmem [shape: f32[4,1,128], index: 3, kind: input, shape index: {}]
  %s4 = inlined_call_operand.vmem [shape: f32[4,75,128], index: 4, kind: input, shape index: {}]
  %s5 = inlined_call_operand.vmem [shape: f32[4,4,128], index: 5, kind: input, shape index: {}]
  %s6 = inlined_call_operand.hbm [shape: f32[8,80,128], index: 6, kind: output, shape index: {}]
  %s7 = sld [smem:[#allocation0]]
  $region57: #{tpu_custom_call.1} parent=0
    _
  %s9 = ssub.s32 1, %s7
  %s10 = scalar_select 0, %s9, %s7
  $region1: #{tpu_custom_call.1} parent=0
    #allocation2 [shape = 'u8[327680]{0}', space=vmem, size = 0x50000, scoped, tag = 'output window, operand 0']
    #allocation3 [shape = 's32[2]{0}', space=sflag, size = 0x8, scoped, tag = 'scoped memory for tpu_custom_call.1']
    %11 = vsyncpa [#allocation3], 0
    %s12 = scalar_lea.sflag [#allocation3], 1
    %13 = vsyncpa %s12, 0
    loop: start=0, step=1, limit=4
    $region2: #{tpu_custom_call.1} parent=1 // loop_pre_header
      _
    $region3: #{tpu_custom_call.1} parent=1 // loop_header
      %s15 = sphi 0, %s19
      %p16 = scmp.ge.s32.totalorder %s15, 4
      %s25 = sphi 0, %s27
      %s28 = sphi 0, %s25
      %s29 = sphi 0, %s28
      %s45 = sphi 0, %s29
      %s51 = sphi 0, %s53
      %s54 = sphi 0, %s51
      %s55 = sphi 0, %s54
      %s71 = sphi 0, %s55
      %s77 = sphi 0, %s79
      %s80 = sphi 0, %s77
      %s81 = sphi 0, %s80
      %s97 = sphi 0, %s81
      %s101 = sphi 0, %s101
      %s103 = sphi 0, %s101
      %s104 = sphi 0, %s103
      %s118 = sphi 0, %s104
      %s122 = sphi 0, %s122
      %s124 = sphi 0, %s122
      %s125 = sphi 0, %s124
      %s139 = sphi 0, %s125
      %s143 = sphi 0, %s143
      %s145 = sphi 0, %s143
      %s146 = sphi 0, %s145
      %s160 = sphi 0, %s146
      %s166 = sphi 0, %s168
      %s169 = sphi 0, %s166
      %s170 = sphi 0, %s169
      %s186 = sphi 0, %s170
    $region4: #{tpu_custom_call.1} parent=1 // loop_header_branch
      %18 = sbr.rel (%p16) target = $region8
    $region5: #{tpu_custom_call.1} parent=1 // loop_body
      %s20 = ssub.s32 %s15, 1
      %s21 = ssub.s32 %s15, 2
      %s22 = sadd.s32 %s15, 1
      %s23 = ssub.s32 %s15, %s22
      %p24 = scmp.eq.s32.totalorder %s23, 0
      %s26 = sadd.s32 %s25, 1
      %s27 = scalar_select %p24, %s25, %s26
      %p30 = pneg %p24
      %p31 = scmp.eq.s32.totalorder %s15, 1
      %p32 = por %p30, %p31
      %p33 = scmp.ne.s32.totalorder %s25, %s28
      %p34 = scmp.eq.s32.totalorder %s15, 0
      %p35 = por %p33, %p34
      %p36 = scmp.ne.s32.totalorder %s25, %s28
      %p37 = scmp.eq.s32.totalorder %s20, 1
      %p38 = por %p36, %p37
      %p39 = scmp.ne.s32.totalorder %s28, %s29
      %p40 = scmp.eq.s32.totalorder %s20, 0
      %p41 = por %p39, %p40
      %p42 = scmp.ne.s32.totalorder %s28, %s29
      %p43 = scmp.eq.s32.totalorder %s21, 1
      %p44 = por %p42, %p43
      %p46 = scmp.ne.s32.totalorder %s29, %s45
      %p47 = scmp.eq.s32.totalorder %s21, 0
      %p48 = por %p46, %p47
      %s49 = ssub.s32 %s15, %s22
      %p50 = scmp.eq.s32.totalorder %s49, 0
      %s52 = sadd.s32 %s51, 1
      %s53 = scalar_select %p50, %s51, %s52
      %p56 = pneg %p50
      %p57 = scmp.eq.s32.totalorder %s15, 1
      %p58 = por %p56, %p57
      %p59 = scmp.ne.s32.totalorder %s51, %s54
      %p60 = scmp.eq.s32.totalorder %s15, 0
      %p61 = por %p59, %p60
      %p62 = scmp.ne.s32.totalorder %s51, %s54
      %p63 = scmp.eq.s32.totalorder %s20, 1
      %p64 = por %p62, %p63
      %p65 = scmp.ne.s32.totalorder %s54, %s55
      %p66 = scmp.eq.s32.totalorder %s20, 0
      %p67 = por %p65, %p66
      %p68 = scmp.ne.s32.totalorder %s54, %s55
      %p69 = scmp.eq.s32.totalorder %s21, 1
      %p70 = por %p68, %p69
      %p72 = scmp.ne.s32.totalorder %s55, %s71
      %p73 = scmp.eq.s32.totalorder %s21, 0
      %p74 = por %p72, %p73
      %s75 = ssub.s32 %s15, %s22
      %p76 = scmp.eq.s32.totalorder %s75, 0
      %s78 = sadd.s32 %s77, 1
      %s79 = scalar_select %p76, %s77, %s78
      %p82 = pneg %p76
      %p83 = scmp.eq.s32.totalorder %s15, 1
      %p84 = por %p82, %p83
      %p85 = scmp.ne.s32.totalorder %s77, %s80
      %p86 = scmp.eq.s32.totalorder %s15, 0
      %p87 = por %p85, %p86
      %p88 = scmp.ne.s32.totalorder %s77, %s80
      %p89 = scmp.eq.s32.totalorder %s20, 1
      %p90 = por %p88, %p89
      %p91 = scmp.ne.s32.totalorder %s80, %s81
      %p92 = scmp.eq.s32.totalorder %s20, 0
      %p93 = por %p91, %p92
      %p94 = scmp.ne.s32.totalorder %s80, %s81
      %p95 = scmp.eq.s32.totalorder %s21, 1
      %p96 = por %p94, %p95
      %p98 = scmp.ne.s32.totalorder %s81, %s97
      %p99 = scmp.eq.s32.totalorder %s21, 0
      %p100 = por %p98, %p99
      %s102 = sadd.s32 %s101, 1
      %p105 = scmp.eq.s32.totalorder %s15, 1
      %p106 = scmp.ne.s32.totalorder %s101, %s103
      %p107 = scmp.eq.s32.totalorder %s15, 0
      %p108 = por %p106, %p107
      %p109 = scmp.ne.s32.totalorder %s101, %s103
      %p110 = scmp.eq.s32.totalorder %s20, 1
      %p111 = por %p109, %p110
      %p112 = scmp.ne.s32.totalorder %s103, %s104
      %p113 = scmp.eq.s32.totalorder %s20, 0
      %p114 = por %p112, %p113
      %p115 = scmp.ne.s32.totalorder %s103, %s104
      %p116 = scmp.eq.s32.totalorder %s21, 1
      %p117 = por %p115, %p116
      %p119 = scmp.ne.s32.totalorder %s104, %s118
      %p120 = scmp.eq.s32.totalorder %s21, 0
      %p121 = por %p119, %p120
      %s123 = sadd.s32 %s122, 1
      %p126 = scmp.eq.s32.totalorder %s15, 1
      %p127 = scmp.ne.s32.totalorder %s122, %s124
      %p128 = scmp.eq.s32.totalorder %s15, 0
      %p129 = por %p127, %p128
      %p130 = scmp.ne.s32.totalorder %s122, %s124
      %p131 = scmp.eq.s32.totalorder %s20, 1
      %p132 = por %p130, %p131
      %p133 = scmp.ne.s32.totalorder %s124, %s125
      %p134 = scmp.eq.s32.totalorder %s20, 0
      %p135 = por %p133, %p134
      %p136 = scmp.ne.s32.totalorder %s124, %s125
      %p137 = scmp.eq.s32.totalorder %s21, 1
      %p138 = por %p136, %p137
      %p140 = scmp.ne.s32.totalorder %s125, %s139
      %p141 = scmp.eq.s32.totalorder %s21, 0
      %p142 = por %p140, %p141
      %s144 = sadd.s32 %s143, 1
      %p147 = scmp.eq.s32.totalorder %s15, 1
      %p148 = scmp.ne.s32.totalorder %s143, %s145
      %p149 = scmp.eq.s32.totalorder %s15, 0
      %p150 = por %p148, %p149
      %p151 = scmp.ne.s32.totalorder %s143, %s145
      %p152 = scmp.eq.s32.totalorder %s20, 1
      %p153 = por %p151, %p152
      %p154 = scmp.ne.s32.totalorder %s145, %s146
      %p155 = scmp.eq.s32.totalorder %s20, 0
      %p156 = por %p154, %p155
      %p157 = scmp.ne.s32.totalorder %s145, %s146
      %p158 = scmp.eq.s32.totalorder %s21, 1
      %p159 = por %p157, %p158
      %p161 = scmp.ne.s32.totalorder %s146, %s160
      %p162 = scmp.eq.s32.totalorder %s21, 0
      %p163 = por %p161, %p162
      %s164 = ssub.s32 %s15, %s22
      %p165 = scmp.eq.s32.totalorder %s164, 0
      %s167 = sadd.s32 %s166, 1
      %s168 = scalar_select %p165, %s166, %s167
      %p171 = pneg %p165
      %p172 = scmp.eq.s32.totalorder %s15, 1
      %p173 = por %p171, %p172
      %p174 = scmp.ne.s32.totalorder %s166, %s169
      %p175 = scmp.eq.s32.totalorder %s15, 0
      %p176 = por %p174, %p175
      %p177 = scmp.ne.s32.totalorder %s166, %s169
      %p178 = scmp.eq.s32.totalorder %s20, 1
      %p179 = por %p177, %p178
      %p180 = scmp.ne.s32.totalorder %s169, %s170
      %p181 = scmp.eq.s32.totalorder %s20, 0
      %p182 = por %p180, %p181
      %p183 = scmp.ne.s32.totalorder %s169, %s170
      %p184 = scmp.eq.s32.totalorder %s21, 1
      %p185 = por %p183, %p184
      %p187 = scmp.ne.s32.totalorder %s170, %s186
      %p188 = scmp.eq.s32.totalorder %s21, 0
      %p189 = por %p187, %p188
      %p190 = scmp.le.s32.totalorder 1, %s15
      %p191 = scmp.lt.s32.totalorder %s15, 3
      %p192 = pnand %p190, %p191
      %p193 = pneg %p192
      // Predicated region
      $region9: #{tpu_custom_call.1} parent=5 // pred_check
        _
      $region10: #{tpu_custom_call.1} parent=5 // pred_check_branch
        %195 = sbr.rel (%p192) target = $region12
      $region11: #{tpu_custom_call.1} parent=5 // pred_region
        %s196 = ssub.s32 %s15, 1
        // Predicated region
        $region13: #{tpu_custom_call.1} parent=11 // pred_check
          %p197 = pneg %p114
        $region14: #{tpu_custom_call.1} parent=11 // pred_check_branch
          %199 = sbr.rel (%p197) target = $region16
        $region15: #{tpu_custom_call.1} parent=11 // pred_region
          _
        $region16: #{tpu_custom_call.1} parent=11 // pred_fallthru
          _
        // Predicated region
        $region17: #{tpu_custom_call.1} parent=11 // pred_check
          %p200 = pneg %p135
        $region18: #{tpu_custom_call.1} parent=11 // pred_check_branch
          %202 = sbr.rel (%p200) target = $region20
        $region19: #{tpu_custom_call.1} parent=11 // pred_region
          _
        $region20: #{tpu_custom_call.1} parent=11 // pred_fallthru
          _
        // Predicated region
        $region21: #{tpu_custom_call.1} parent=11 // pred_check
          %p203 = pneg %p156
        $region22: #{tpu_custom_call.1} parent=11 // pred_check_branch
          %205 = sbr.rel (%p203) target = $region24
        $region23: #{tpu_custom_call.1} parent=11 // pred_region
          _
        $region24: #{tpu_custom_call.1} parent=11 // pred_fallthru
          _
      $region12: #{tpu_custom_call.1} parent=5 // pred_fallthru
        _
      %p206 = scmp.lt.s32.totalorder %s15, 2
      // Predicated region
      $region25: #{tpu_custom_call.1} parent=5 // pred_check
        %p207 = pneg %p206
      $region26: #{tpu_custom_call.1} parent=5 // pred_check_branch
        %209 = sbr.rel (%p207) target = $region28
      $region27: #{tpu_custom_call.1} parent=5 // pred_region
        // Predicated region
        $region29: #{tpu_custom_call.1} parent=27 // pred_check
          %p210 = pneg %p35
        $region30: #{tpu_custom_call.1} parent=27 // pred_check_branch
          %212 = sbr.rel (%p210) target = $region32
        $region31: #{tpu_custom_call.1} parent=27 // pred_region
          %s213 = smul.u32 2, %s15
          %p214 = scmp.lt.s32.totalorder %s213, 3
          %s215 = scalar_select %p214, %s213, 3
          %s216 = scalar_lea.vmem %s0, %s215
          %s217 = smul.u32 2, %s15
        $region32: #{tpu_custom_call.1} parent=27 // pred_fallthru
          _
        // Predicated region
        $region33: #{tpu_custom_call.1} parent=27 // pred_check
          %p218 = pneg %p61
        $region34: #{tpu_custom_call.1} parent=27 // pred_check_branch
          %220 = sbr.rel (%p218) target = $region36
        $region35: #{tpu_custom_call.1} parent=27 // pred_region
          %s221 = smul.u32 2, %s15
          %p222 = scmp.lt.s32.totalorder %s221, 3
          %s223 = scalar_select %p222, %s221, 3
          %s224 = smul.addr %s223, 4
          %s225 = scalar_lea.vmem %s1, %s224
          %s226 = smul.u32 2, %s15
        $region36: #{tpu_custom_call.1} parent=27 // pred_fallthru
          _
        // Predicated region
        $region37: #{tpu_custom_call.1} parent=27 // pred_check
          %p227 = pneg %p87
        $region38: #{tpu_custom_call.1} parent=27 // pred_check_branch
          %229 = sbr.rel (%p227) target = $region40
        $region39: #{tpu_custom_call.1} parent=27 // pred_region
          %s230 = smul.u32 2, %s15
          %p231 = scmp.lt.s32.totalorder %s230, 3
          %s232 = scalar_select %p231, %s230, 3
          %s233 = smul.addr %s232, 10
          %s234 = smul.addr %s233, 8
          %s235 = scalar_lea.vmem %s2, %s234
          %s236 = smul.u32 2, %s15
        $region40: #{tpu_custom_call.1} parent=27 // pred_fallthru
          _
      $region28: #{tpu_custom_call.1} parent=5 // pred_fallthru
        _
      %p237 = scmp.le.s32.totalorder 1, %s15
      %p238 = scmp.lt.s32.totalorder %s15, 3
      %p239 = pnand %p237, %p238
      %p240 = pneg %p239
      // Predicated region
      $region41: #{tpu_custom_call.1} parent=5 // pred_check
        _
      $region42: #{tpu_custom_call.1} parent=5 // pred_check_branch
        %242 = sbr.rel (%p239) target = $region44
      $region43: #{tpu_custom_call.1} parent=5 // pred_region
        %s243 = ssub.s32 %s15, 1
        %s244 = smul.u32 2, %s20
        %p245 = scmp.lt.s32.totalorder %s244, 3
        %s246 = scalar_select %p245, %s244, 3
        %s247 = scalar_lea.vmem %s0, %s246
        %p248 = pneg %p41
        %p249 = pneg %p38
        %s250 = smul.u32 2, %s20
        %p251 = scmp.lt.s32.totalorder %s250, 3
        %s252 = scalar_select %p251, %s250, 3
        %s253 = smul.addr %s252, 4
        %s254 = scalar_lea.vmem %s1, %s253
        %p255 = pneg %p67
        %p256 = pneg %p64
        %s257 = smul.u32 2, %s20
        %p258 = scmp.lt.s32.totalorder %s257, 3
        %s259 = scalar_select %p258, %s257, 3
        %s260 = smul.addr %s259, 10
        %s261 = smul.addr %s260, 8
        %s262 = scalar_lea.vmem %s2, %s261
        %p263 = pneg %p93
        %p264 = pneg %p90
        %p265 = pneg %p114
        %p266 = pneg %p111
        %p267 = pneg %p135
        %p268 = pneg %p132
        %p269 = pneg %p156
        %p270 = pneg %p153
        %p271 = pneg %p182
        %p272 = pneg %p179
        %s273 = sand.u32 %s169, 1
        %s274 = scalar_lea.sflag [#allocation3], %s273
        %s275 = sand.u32 %s169, 1
        %s276 = smul.addr %s275, 320
        %s277 = scalar_lea.vmem [#allocation2], %s276
        %s278 = smul.u32 2, %s20
        %p279 = scmp.lt.s32.totalorder %s278, 3
        %s280 = scalar_select %p279, %s278, 3
        %s281 = scalar_lea.vmem %s0, %s280
        %s282 = smul.u32 2, %s20
        %s283 = smul.u32 2, %s20
        %p284 = scmp.lt.s32.totalorder %s283, 3
        %s285 = scalar_select %p284, %s283, 3
        %s286 = smul.addr %s285, 4
        %s287 = scalar_lea.vmem %s1, %s286
        %s288 = smul.u32 2, %s20
        %s289 = smul.u32 2, %s20
        %p290 = scmp.lt.s32.totalorder %s289, 3
        %s291 = scalar_select %p290, %s289, 3
        %s292 = smul.addr %s291, 10
        %s293 = smul.addr %s292, 8
        %s294 = scalar_lea.vmem %s2, %s293
        %s295 = smul.u32 2, %s20
        %s296 = smul.u32 4, %s20
        %s297 = scalar_lea.vmem %s3, %s20
        %v298 = vld [vmem:[%s297] sm:$0x1]
        %v299 = vld [vmem:[%s297 + $0x1] sm:$0x1]
        %300 = vst [vmem:[%s277] sm:$0x1] %v298
        %301 = vst [vmem:[%s277 + $0x50] sm:$0x1] %v299
        %s302 = smul.u32 %s20, 80
        %s303 = scalar_lea.vmem %s4, %s302
        %v304 = vld [vmem:[%s303] sm:$0xff]
        %v305 = vld [vmem:[%s303 + $0x8] sm:$0xff]
        %v306 = vld [vmem:[%s303 + $0x10] sm:$0xff]
        %v307 = vld [vmem:[%s303 + $0x18] sm:$0xff]
        %v308 = vld [vmem:[%s303 + $0x20] sm:$0xff]
        %v309 = vld [vmem:[%s303 + $0x28] sm:$0xff]
        %v310 = vld [vmem:[%s303 + $0x30] sm:$0xff]
        %v311 = vld [vmem:[%s303 + $0x38] sm:$0xff]
        %v312 = vld [vmem:[%s303 + $0x40] sm:$0xff]
        %v313 = vld [vmem:[%s303 + $0x48] sm:$0x7]
        %v314 = vld [vmem:[%s303 + $0x50] sm:$0xff]
        %v315 = vld [vmem:[%s303 + $0x58] sm:$0xff]
        %v316 = vld [vmem:[%s303 + $0x60] sm:$0xff]
        %v317 = vld [vmem:[%s303 + $0x68] sm:$0xff]
        %v318 = vld [vmem:[%s303 + $0x70] sm:$0xff]
        %v319 = vld [vmem:[%s303 + $0x78] sm:$0xff]
        %v320 = vld [vmem:[%s303 + $0x80] sm:$0xff]
        %v321 = vld [vmem:[%s303 + $0x88] sm:$0xff]
        %v322 = vld [vmem:[%s303 + $0x90] sm:$0xff]
        %v323 = vld [vmem:[%s303 + $0x98] sm:$0x7]
        %324 = vst [vmem:[%s277 + $0x1] sm:$0xff] %v304
        %325 = vst [vmem:[%s277 + $0x9] sm:$0xff] %v305
        %326 = vst [vmem:[%s277 + $0x11] sm:$0xff] %v306
        %327 = vst [vmem:[%s277 + $0x19] sm:$0xff] %v307
        %328 = vst [vmem:[%s277 + $0x21] sm:$0xff] %v308
        %329 = vst [vmem:[%s277 + $0x29] sm:$0xff] %v309
        %330 = vst [vmem:[%s277 + $0x31] sm:$0xff] %v310
        %331 = vst [vmem:[%s277 + $0x39] sm:$0xff] %v311
        %332 = vst [vmem:[%s277 + $0x41] sm:$0xff] %v312
        %333 = vst [vmem:[%s277 + $0x49] sm:$0x7] %v313
        %334 = vst [vmem:[%s277 + $0x51] sm:$0xff] %v314
        %335 = vst [vmem:[%s277 + $0x59] sm:$0xff] %v315
        %336 = vst [vmem:[%s277 + $0x61] sm:$0xff] %v316
        %337 = vst [vmem:[%s277 + $0x69] sm:$0xff] %v317
        %338 = vst [vmem:[%s277 + $0x71] sm:$0xff] %v318
        %339 = vst [vmem:[%s277 + $0x79] sm:$0xff] %v319
        %340 = vst [vmem:[%s277 + $0x81] sm:$0xff] %v320
        %341 = vst [vmem:[%s277 + $0x89] sm:$0xff] %v321
        %342 = vst [vmem:[%s277 + $0x91] sm:$0xff] %v322
        %343 = vst [vmem:[%s277 + $0x99] sm:$0x7] %v323
        %s344 = smul.u32 %s20, 4
        %s345 = scalar_lea.vmem %s5, %s344
        %v346 = vld [vmem:[%s345] sm:$0xf]
        %v347 = vld [vmem:[%s345 + $0x4] sm:$0xf]
        %348 = vst [vmem:[%s277 + $0x4c] sm:$0xf] %v346
        %349 = vst [vmem:[%s277 + $0x9c] sm:$0xf] %v347
        %v350 = vld [vmem:[%s281] sm:$0x1]
        %v351 = vld [vmem:[%s281 + $0x1] sm:$0x1]
        %s352 = scalar_lea.vmem %s277, 160 [#allocation2]
        %353 = vst [vmem:[%s352] sm:$0x1] %v350
        %354 = vst [vmem:[%s352 + $0x50] sm:$0x1] %v351
        %v355 = vld [vmem:[%s287] sm:$0xf]
        %v356 = vld [vmem:[%s287 + $0x4] sm:$0xf]
        %357 = vst [vmem:[%s352 + $0x1] sm:$0xf] %v355
        %358 = vst [vmem:[%s352 + $0x51] sm:$0xf] %v356
        %v359 = vld [vmem:[%s294] sm:$0xff]
        %v360 = vld [vmem:[%s294 + $0x8] sm:$0xff]
        %v361 = vld [vmem:[%s294 + $0x10] sm:$0xff]
        %v362 = vld [vmem:[%s294 + $0x18] sm:$0xff]
        %v363 = vld [vmem:[%s294 + $0x20] sm:$0xff]
        %v364 = vld [vmem:[%s294 + $0x28] sm:$0xff]
        %v365 = vld [vmem:[%s294 + $0x30] sm:$0xff]
        %v366 = vld [vmem:[%s294 + $0x38] sm:$0xff]
        %v367 = vld [vmem:[%s294 + $0x40] sm:$0xff]
        %v368 = vld [vmem:[%s294 + $0x48] sm:$0x7]
        %v369 = vld [vmem:[%s294 + $0x50] sm:$0xff]
        %v370 = vld [vmem:[%s294 + $0x58] sm:$0xff]
        %v371 = vld [vmem:[%s294 + $0x60] sm:$0xff]
        %v372 = vld [vmem:[%s294 + $0x68] sm:$0xff]
        %v373 = vld [vmem:[%s294 + $0x70] sm:$0xff]
        %v374 = vld [vmem:[%s294 + $0x78] sm:$0xff]
        %v375 = vld [vmem:[%s294 + $0x80] sm:$0xff]
        %v376 = vld [vmem:[%s294 + $0x88] sm:$0xff]
        %v377 = vld [vmem:[%s294 + $0x90] sm:$0xff]
        %v378 = vld [vmem:[%s294 + $0x98] sm:$0x7]
        %379 = vst [vmem:[%s352 + $0x5] sm:$0xff] %v359
        %380 = vst [vmem:[%s352 + $0xd] sm:$0xff] %v360
        %381 = vst [vmem:[%s352 + $0x15] sm:$0xff] %v361
        %382 = vst [vmem:[%s352 + $0x1d] sm:$0xff] %v362
        %383 = vst [vmem:[%s352 + $0x25] sm:$0xff] %v363
        %384 = vst [vmem:[%s352 + $0x2d] sm:$0xff] %v364
        %385 = vst [vmem:[%s352 + $0x35] sm:$0xff] %v365
        %386 = vst [vmem:[%s352 + $0x3d] sm:$0xff] %v366
        %387 = vst [vmem:[%s352 + $0x45] sm:$0xff] %v367
        %388 = vst [vmem:[%s352 + $0x4d] sm:$0x7] %v368
        %389 = vst [vmem:[%s352 + $0x55] sm:$0xff] %v369
        %390 = vst [vmem:[%s352 + $0x5d] sm:$0xff] %v370
        %391 = vst [vmem:[%s352 + $0x65] sm:$0xff] %v371
        %392 = vst [vmem:[%s352 + $0x6d] sm:$0xff] %v372
        %393 = vst [vmem:[%s352 + $0x75] sm:$0xff] %v373
        %394 = vst [vmem:[%s352 + $0x7d] sm:$0xff] %v374
        %395 = vst [vmem:[%s352 + $0x85] sm:$0xff] %v375
        %396 = vst [vmem:[%s352 + $0x8d] sm:$0xff] %v376
        %397 = vst [vmem:[%s352 + $0x95] sm:$0xff] %v377
        %398 = vst [vmem:[%s352 + $0x9d] sm:$0x7] %v378
        %s399 = sand.u32 %s169, 1
        %s400 = scalar_lea.sflag [#allocation3], %s399
        %s401 = sand.u32 %s169, 1
        %s402 = smul.addr %s401, 320
        %s403 = scalar_lea.vmem [#allocation2], %s402
        // Predicated region
        $region45: #{tpu_custom_call.1} parent=43 // pred_check
          %p404 = pneg %p179
        $region46: #{tpu_custom_call.1} parent=43 // pred_check_branch
          %406 = sbr.rel (%p404) target = $region48
        $region47: #{tpu_custom_call.1} parent=43 // pred_region
          %s407 = smul.u32 4, %s20
          %s409 = ssub.s32 5120, 5120
          %410 = vsyncadd %s400, %s409
          %s411 = smul.addr %s407, 10
          %s412 = smul.addr %s411, 128
          %s413 = scalar_lea.hbm %s6, %s412
          %s414 = sshll.u32 %s403, 4
          %s415 = int_to_ptr.vmem [resolvable:$true] %s414
          %420 = dma.vmem_to_hbm [thread:$0]  %s415, 5120, %s413, %s400, 128, 128, 8
        $region48: #{tpu_custom_call.1} parent=43 // pred_fallthru
          _
      $region44: #{tpu_custom_call.1} parent=5 // pred_fallthru
        _
      %p421 = scmp.le.s32.totalorder 2, %s15
      // Predicated region
      $region49: #{tpu_custom_call.1} parent=5 // pred_check
        %p422 = pneg %p421
      $region50: #{tpu_custom_call.1} parent=5 // pred_check_branch
        %424 = sbr.rel (%p422) target = $region52
      $region51: #{tpu_custom_call.1} parent=5 // pred_region
        %s425 = ssub.s32 %s15, 2
        // Predicated region
        $region53: #{tpu_custom_call.1} parent=51 // pred_check
          %p426 = pneg %p185
        $region54: #{tpu_custom_call.1} parent=51 // pred_check_branch
          %428 = sbr.rel (%p426) target = $region56
        $region55: #{tpu_custom_call.1} parent=51 // pred_region
          %s429 = sand.u32 %s170, 1
          %s430 = scalar_lea.sflag [#allocation3], %s429
          %s431 = sand.u32 %s170, 1
          %s432 = smul.addr %s431, 320
          %s433 = scalar_lea.vmem [#allocation2], %s432
          %434 = dma.done %s430, 5120
        $region56: #{tpu_custom_call.1} parent=51 // pred_fallthru
          _
      $region52: #{tpu_custom_call.1} parent=5 // pred_fallthru
        _
    $region6: #{tpu_custom_call.1} parent=1 // loop_footer
      %s19 = sadd.s32 1, %s15
    $region7: #{tpu_custom_call.1} parent=1 // loop_footer_branch
      %14 = sbr.rel target = $region3
    $region8: #{tpu_custom_call.1} parent=1 // loop_exit
      _
    %435 = vsyncpa [#allocation3], 1
    %s436 = scalar_lea.sflag [#allocation3], 1
    %437 = vsyncpa %s436, 1

</llo_original>
